<compile_context>
chip_gen: v6e
topology: v6e:2x2x1
jax: 0.10.0
libtpu: 0.0.40
codegen_flags: <defaults>
</compile_context>

<pallas_src>
import functools

import jax
import jax.numpy as jnp
from jax.experimental import pallas as pl
from jax.experimental.pallas import tpu as pltpu


def _round_up(x, m):
    return (x + m - 1) // m * m


def qnet_kernel(sa_ref, w1_ref, b1_ref, w2_ref, b2_ref, wq_ref, bq_ref, q_ref):
    # ---- layer 1: h1 = relu([s|a] @ W1 + b1)  (bf16 MXU, f32 acc) ----------
    h1 = jnp.dot(sa_ref[...], w1_ref[...], preferred_element_type=jnp.float32)
    h1 = jnp.maximum(h1 + b1_ref[...], 0.0)                      # f32 epilogue

    # ---- layer 2: h2 = relu(h1 @ W2 + b2) -----------------------------------
    h2 = jnp.dot(h1.astype(jnp.bfloat16), w2_ref[...],
                 preferred_element_type=jnp.float32)
    h2 = jnp.maximum(h2 + b2_ref[...], 0.0)

    # ---- head: Q = h2 @ wq + bq  as VPU mul + XLU lane reduction ------------
    # wq is a (1, 256) row; the cross-lane sum and the (tb,) -> row relayout
    # both run on the otherwise-idle XLU.  Result is stored lane-dense.
    q = jnp.sum(h2 * wq_ref[...], axis=-1) + bq_ref[0, 0]        # (tb,) f32
    q_ref[...] = q.reshape(q_ref.shape)                          # (1, 1, tb)


@functools.partial(jax.jit, static_argnames=("tile_b",))
def q_net_forward(s, a, params, tile_b=2048):
    """Pallas implementation of q_Net.forward(s, a).

    s: (B, s_dim) f32, a: (B, a_dim) f32 -> Q: (B, 1) f32.
    tile_b: batch tile; large (1024-4096) to amortize per-step pipeline
    overhead, automatically capped so the grid has >=2 steps (v7x megacore).
    """
    w1, b1, w2, b2, wq, bq = params
    B, s_dim = s.shape
    a_dim = a.shape[1]
    K = s_dim + a_dim

    # Fused cast+concat in the wrapper: the bf16 (B, K) slab is the only
    # per-step HBM stream, and layer 1 becomes a single matmul.
    sa = jnp.concatenate([s, a], axis=1).astype(jnp.bfloat16)

    # Batch tile: as large as requested, but keep >=2 grid steps when B allows
    # (both v7x TensorCores busy); always a multiple of 8 (sublane alignment).
    tb = min(tile_b, _round_up(pl.cdiv(B, 2), 8))
    tb = _round_up(max(tb, 8), 8)
    num_tiles = pl.cdiv(B, tb)          # no padding: tail block is partial

    def pinned(shape):                  # VMEM-resident params (same block each step)
        return pl.BlockSpec(shape, lambda i: (0, 0))

    q_rows = pl.pallas_call(
        qnet_kernel,
        out_shape=jax.ShapeDtypeStruct((num_tiles, 1, tb), jnp.float32),
        grid=(num_tiles,),
        in_specs=[
            pl.BlockSpec((tb, K), lambda i: (i, 0)),            # [s|a] streamed, bf16
            pinned(w1.shape),                                   # W1 (K, 256)   bf16
            pinned(b1.shape),                                   # b1 (1, 256)   f32
            pinned(w2.shape),                                   # W2 (256, 256) bf16
            pinned(b2.shape),                                   # b2 (1, 256)   f32
            pinned(wq.shape),                                   # wq (1, 256)   f32
            pl.BlockSpec(memory_space=pltpu.MemorySpace.SMEM),  # bq (1, 1) scalar
        ],
        out_specs=pl.BlockSpec((1, 1, tb), lambda i: (i, 0, 0)),  # lane-dense rows
        compiler_params=pltpu.CompilerParams(
            dimension_semantics=("parallel",),       # megacore shard on v7x
            vmem_limit_bytes=32 * 1024 * 1024,       # ample up to tile_b~4096
        ),
    )(sa, w1, b1, w2, b2, wq, bq)

    # (num_tiles, 1, tb) -> (B, 1); tail-tile garbage rows are discarded here.
    return q_rows.reshape(num_tiles * tb)[:B].reshape(B, 1)


def init_params(key, s_dim, a_dim, hidden=256):
    """Synthetic init mirroring q_Net.__init__ layer shapes.

    PyTorch: l1.weight (256, s+a), l2.weight (256, 256), lQ.weight (1, 256).
    Stored transposed (in, out).  Matmul weights are bf16 (MXU-native);
    biases and wq (VPU/XLU head) stay f32.
    """
    k1, k2, k3 = jax.random.split(key, 3)
    w1 = (0.1 * jax.random.normal(k1, (s_dim + a_dim, hidden), dtype=jnp.float32)
          ).astype(jnp.bfloat16)
    b1 = jnp.zeros((1, hidden), dtype=jnp.float32)
    w2 = (0.1 * jax.random.normal(k2, (hidden, hidden), dtype=jnp.float32)
          ).astype(jnp.bfloat16)
    b2 = jnp.zeros((1, hidden), dtype=jnp.float32)
    # lQ: orthogonal_(gain=0.01) approximated by a normalized gaussian * 0.01,
    # stored as a (1, hidden) row for the VPU+XLU head; bias zeroed.
    wq = jax.random.normal(k3, (1, hidden), dtype=jnp.float32)
    wq = 0.01 * wq / jnp.linalg.norm(wq)
    bq = jnp.zeros((1, 1), dtype=jnp.float32)
    return (w1, b1, w2, b2, wq, bq)
    # TODO(synk): noisy=True (Linear_noisy) branch and the Adam optimizer are
    # training-side features with no forward-kernel equivalent here.


def _reference(s, a, params):
    """Pure-JAX reference with matching precision (bf16 matmuls, f32 acc)."""
    w1, b1, w2, b2, wq, bq = params
    sa = jnp.concatenate([s, a], axis=1).astype(jnp.bfloat16)
    h1 = jnp.maximum(
        jnp.dot(sa, w1, preferred_element_type=jnp.float32) + b1, 0.0)
    h2 = jnp.maximum(
        jnp.dot(h1.astype(jnp.bfloat16), w2,
                preferred_element_type=jnp.float32) + b2, 0.0)
    return jnp.sum(h2 * wq, axis=-1, keepdims=True) + bq


if __name__ == "__main__":
    s_dim, a_dim = 16, 4
    key = jax.random.PRNGKey(0)
    kp, ks, ka = jax.random.split(key, 3)
    params = init_params(kp, s_dim, a_dim)

    # Exact-tile batch.
    batch = 8
    s = jax.random.normal(ks, (batch, s_dim), dtype=jnp.float32)
    a = jax.random.normal(ka, (batch, a_dim), dtype=jnp.float32)
    q = q_net_forward(s, a, params)
    jax.block_until_ready(q)
    assert q.shape == (batch, 1)
    assert jnp.allclose(q, _reference(s, a, params), atol=1e-3, rtol=1e-3), \
        "mismatch vs reference (exact tile)"

    # Ragged batch: exercises the no-pad partial tail tile + multi-step grid.
    batch2 = 13
    s2 = jax.random.normal(ks, (batch2, s_dim), dtype=jnp.float32)
    a2 = jax.random.normal(ka, (batch2, a_dim), dtype=jnp.float32)
    q2 = q_net_forward(s2, a2, params)
    jax.block_until_ready(q2)
    assert q2.shape == (batch2, 1)
    assert jnp.allclose(q2, _reference(s2, a2, params), atol=1e-3, rtol=1e-3), \
        "mismatch vs reference (ragged batch)"

    print("KERNEL_OK")
</pallas_src>

<mosaic_0001>
module attributes {stable_mosaic.version = 11 : i64} {
  func.func @qnet_kernel(%arg0: i32, %arg1: memref<8x20xbf16, #tpu.memory_space<vmem>>, %arg2: memref<20x256xbf16, #tpu.memory_space<vmem>>, %arg3: memref<1x256xf32, #tpu.memory_space<vmem>>, %arg4: memref<256x256xbf16, #tpu.memory_space<vmem>>, %arg5: memref<1x256xf32, #tpu.memory_space<vmem>>, %arg6: memref<1x256xf32, #tpu.memory_space<vmem>>, %arg7: memref<1x1xf32, #tpu.memory_space<smem>>, %arg8: memref<1x1x8xf32, #tpu.memory_space<vmem>>) attributes {dimension_semantics = [#tpu.dimension_semantics<parallel>], iteration_bounds = array<i64: 1>, scalar_prefetch = 0 : i64, scratch_operands = 0 : i64, tpu.core_type = #tpu.core_type<tc>, window_params = [{transform_indices = @transform_0, window_bounds = array<i64: 8, 20>}, {pipeline_mode = #tpu.pipeline_mode<synchronous>, transform_indices = @transform_1, window_bounds = array<i64: 20, 256>}, {pipeline_mode = #tpu.pipeline_mode<synchronous>, transform_indices = @transform_2, window_bounds = array<i64: 1, 256>}, {pipeline_mode = #tpu.pipeline_mode<synchronous>, transform_indices = @transform_3, window_bounds = array<i64: 256, 256>}, {pipeline_mode = #tpu.pipeline_mode<synchronous>, transform_indices = @transform_4, window_bounds = array<i64: 1, 256>}, {pipeline_mode = #tpu.pipeline_mode<synchronous>, transform_indices = @transform_5, window_bounds = array<i64: 1, 256>}, {transform_indices = @transform_6, window_bounds = array<i64: 1, 1>}, {transform_indices = @transform_7, window_bounds = array<i64: 1, 1, 8>}]} {
    %c0 = arith.constant 0 : index
    %c0_0 = arith.constant 0 : index
    %0 = vector.load %arg1[%c0, %c0_0] : memref<8x20xbf16, #tpu.memory_space<vmem>>, vector<8x20xbf16>
    %c0_1 = arith.constant 0 : index
    %c0_2 = arith.constant 0 : index
    %1 = vector.load %arg2[%c0_1, %c0_2] : memref<20x256xbf16, #tpu.memory_space<vmem>>, vector<20x256xbf16>
    %cst = arith.constant dense<0.000000e+00> : vector<8x256xf32>
    %2 = tpu.matmul %0, %1, %cst {dimension_numbers = #tpu.dot_dimension_numbers<[1], [0], [0], [1], [0, 0, 1, 1], [], []>} : vector<8x20xbf16>, vector<20x256xbf16>, vector<8x256xf32> -> vector<8x256xf32>
    %c0_3 = arith.constant 0 : index
    %c0_4 = arith.constant 0 : index
    %3 = vector.load %arg3[%c0_3, %c0_4] : memref<1x256xf32, #tpu.memory_space<vmem>>, vector<1x256xf32>
    %4 = vector.broadcast %3 : vector<1x256xf32> to vector<8x256xf32>
    %5 = arith.addf %2, %4 : vector<8x256xf32>
    %cst_5 = arith.constant 0.000000e+00 : f32
    %6 = vector.broadcast %cst_5 : f32 to vector<8x256xf32>
    %7 = arith.maximumf %5, %6 : vector<8x256xf32>
    %8 = arith.truncf %7 : vector<8x256xf32> to vector<8x256xbf16>
    %c0_6 = arith.constant 0 : index
    %c0_7 = arith.constant 0 : index
    %9 = vector.load %arg4[%c0_6, %c0_7] : memref<256x256xbf16, #tpu.memory_space<vmem>>, vector<256x256xbf16>
    %cst_8 = arith.constant dense<0.000000e+00> : vector<8x256xf32>
    %10 = tpu.matmul %8, %9, %cst_8 {dimension_numbers = #tpu.dot_dimension_numbers<[1], [0], [0], [1], [0, 0, 1, 1], [], []>} : vector<8x256xbf16>, vector<256x256xbf16>, vector<8x256xf32> -> vector<8x256xf32>
    %c0_9 = arith.constant 0 : index
    %c0_10 = arith.constant 0 : index
    %11 = vector.load %arg5[%c0_9, %c0_10] : memref<1x256xf32, #tpu.memory_space<vmem>>, vector<1x256xf32>
    %12 = vector.broadcast %11 : vector<1x256xf32> to vector<8x256xf32>
    %13 = arith.addf %10, %12 : vector<8x256xf32>
    %cst_11 = arith.constant 0.000000e+00 : f32
    %14 = vector.broadcast %cst_11 : f32 to vector<8x256xf32>
    %15 = arith.maximumf %13, %14 : vector<8x256xf32>
    %c0_12 = arith.constant 0 : index
    %c0_13 = arith.constant 0 : index
    %16 = vector.load %arg6[%c0_12, %c0_13] : memref<1x256xf32, #tpu.memory_space<vmem>>, vector<1x256xf32>
    %17 = vector.broadcast %16 : vector<1x256xf32> to vector<8x256xf32>
    %18 = arith.mulf %15, %17 : vector<8x256xf32>
    %cst_14 = arith.constant dense<0.000000e+00> : vector<8xf32>
    %19 = vector.multi_reduction <add>, %18, %cst_14 [1] : vector<8x256xf32> to vector<8xf32>
    %c0_15 = arith.constant 0 : index
    %c0_16 = arith.constant 0 : index
    %20 = memref.load %arg7[%c0_15, %c0_16] : memref<1x1xf32, #tpu.memory_space<smem>>
    %21 = vector.broadcast %20 : f32 to vector<8xf32>
    %22 = arith.addf %19, %21 : vector<8xf32>
    %23 = vector.shape_cast %22 : vector<8xf32> to vector<1x1x8xf32>
    %c0_17 = arith.constant 0 : index
    %c0_18 = arith.constant 0 : index
    %c0_19 = arith.constant 0 : index
    %24 = vector.load %arg8[%c0_17, %c0_18, %c0_19] : memref<1x1x8xf32, #tpu.memory_space<vmem>>, vector<1x1x8xf32>
    tpu.vector_store %arg8[%c0_17, %c0_18, %c0_19], %23 {strides = array<i32>} : memref<1x1x8xf32, #tpu.memory_space<vmem>>, vector<1x1x8xf32>,
    return
  }
  func.func @transform_0(%arg0: i32) -> (i32, i32) {
    %c0_i32 = arith.constant 0 : i32
    %c0_i32_0 = arith.constant 0 : i32
    return %arg0, %c0_i32 : i32, i32
  }
  func.func @transform_1(%arg0: i32) -> (i32, i32) {
    %c0_i32 = arith.constant 0 : i32
    %c0_i32_0 = arith.constant 0 : i32
    %c0_i32_1 = arith.constant 0 : i32
    return %c0_i32, %c0_i32_0 : i32, i32
  }
  func.func @transform_2(%arg0: i32) -> (i32, i32) {
    %c0_i32 = arith.constant 0 : i32
    %c0_i32_0 = arith.constant 0 : i32
    %c0_i32_1 = arith.constant 0 : i32
    return %c0_i32, %c0_i32_0 : i32, i32
  }
  func.func @transform_3(%arg0: i32) -> (i32, i32) {
    %c0_i32 = arith.constant 0 : i32
    %c0_i32_0 = arith.constant 0 : i32
    %c0_i32_1 = arith.constant 0 : i32
    return %c0_i32, %c0_i32_0 : i32, i32
  }
  func.func @transform_4(%arg0: i32) -> (i32, i32) {
    %c0_i32 = arith.constant 0 : i32
    %c0_i32_0 = arith.constant 0 : i32
    %c0_i32_1 = arith.constant 0 : i32
    return %c0_i32, %c0_i32_0 : i32, i32
  }
  func.func @transform_5(%arg0: i32) -> (i32, i32) {
    %c0_i32 = arith.constant 0 : i32
    %c0_i32_0 = arith.constant 0 : i32
    %c0_i32_1 = arith.constant 0 : i32
    return %c0_i32, %c0_i32_0 : i32, i32
  }
  func.func @transform_6(%arg0: i32) -> (i32, i32) {
    %c0_i32 = arith.constant 0 : i32
    %c0_i32_0 = arith.constant 0 : i32
    %c0_i32_1 = arith.constant 0 : i32
    return %c0_i32, %c0_i32_0 : i32, i32
  }
  func.func @transform_7(%arg0: i32) -> (i32, i32, i32) {
    %c0_i32 = arith.constant 0 : i32
    %c0_i32_0 = arith.constant 0 : i32
    %c0_i32_1 = arith.constant 0 : i32
    return %arg0, %c0_i32, %c0_i32_0 : i32, i32, i32
  }
}

</mosaic_0001>

<llo_original>
// kernel: q_net_forward.1
$region0: #{q_net_forward.1}
  #allocation0 [shape = 'u32[]', space=smem, size = 0x4, offset = 0x4, fixed_abs, tag = 'smem constant byte address 0x4 - core index']
  #allocation1 [shape = 'u32[144,128]{1,0:T(1,128)}', space=vmem, size = 0x12000, scoped, tag = 'internal scratch']
  #allocation2 [shape = 'f32[1,1]{1,0:T(1,128)S(6)}', space=smem, size = 0x200, scoped, tag = 'scoped memory for q_net_forward.1']
  %s0 = inlined_call_operand.vmem [shape: bf16[8,20], index: 0, kind: input, shape index: {}]
  %s1 = inlined_call_operand.vmem [shape: bf16[20,256], index: 1, kind: input, shape index: {}]
  %s2 = inlined_call_operand.vmem [shape: f32[1,256], index: 2, kind: input, shape index: {}]
  %s3 = inlined_call_operand.hbm [shape: bf16[256,256], index: 3, kind: input, shape index: {}]
  %s4 = inlined_call_operand.vmem [shape: f32[1,256], index: 4, kind: input, shape index: {}]
  %s5 = inlined_call_operand.vmem [shape: f32[1,256], index: 5, kind: input, shape index: {}]
  %s6 = inlined_call_operand.<no memory space> [shape: f32[1,1], index: 6, kind: input, shape index: {}]
  %s7 = inlined_call_operand.hbm [shape: f32[1,1,8], index: 7, kind: output, shape index: {}]
  %s8 = sld [smem:[#allocation0]]
  $region42: #{q_net_forward.1} parent=0
    _
  %s10 = ssub.s32 1, %s8
  %s11 = scalar_select 0, %s10, %s8
  %12 = sst [smem:[#allocation2]] %s6
  $region1: #{q_net_forward.1} parent=0
    #allocation3 [shape = 'u8[131072]{0}', space=vmem, size = 0x20000, scoped, tag = 'input window, operand 3, single buffered']
    #allocation4 [shape = 's32[1]{0}', space=sflag, size = 0x4, scoped, tag = 'scoped memory for q_net_forward.1']
    #allocation5 [shape = 's32[1]{0}', space=sflag, size = 0x4, scoped, tag = 'scoped memory for q_net_forward.1']
    #allocation6 [shape = 'u8[512]{0}', space=vmem, size = 0x400, scoped, tag = 'output window, operand 0, single buffered']
    %13 = vsyncpa [#allocation4], 0
    %14 = vsyncpa [#allocation5], 0
    // Predicated region
    $region2: #{q_net_forward.1} parent=1 // pred_check
      _
    $region3: #{q_net_forward.1} parent=1 // pred_check_branch
      %16 = sbr.rel (0) target = $region5
    $region4: #{q_net_forward.1} parent=1 // pred_region
      _
    $region5: #{q_net_forward.1} parent=1 // pred_fallthru
      _
    // Predicated region
    $region6: #{q_net_forward.1} parent=1 // pred_check
      _
    $region7: #{q_net_forward.1} parent=1 // pred_check_branch
      %18 = sbr.rel (0) target = $region9
    $region8: #{q_net_forward.1} parent=1 // pred_region
      _
    $region9: #{q_net_forward.1} parent=1 // pred_fallthru
      _
    // Predicated region
    $region10: #{q_net_forward.1} parent=1 // pred_check
      _
    $region11: #{q_net_forward.1} parent=1 // pred_check_branch
      %20 = sbr.rel (0) target = $region13
    $region12: #{q_net_forward.1} parent=1 // pred_region
      _
    $region13: #{q_net_forward.1} parent=1 // pred_fallthru
      _
    // Predicated region
    $region14: #{q_net_forward.1} parent=1 // pred_check
      _
    $region15: #{q_net_forward.1} parent=1 // pred_check_branch
      %22 = sbr.rel (0) target = $region17
    $region16: #{q_net_forward.1} parent=1 // pred_region
      %s24 = ssub.s32 4096, 4096
      %25 = vsyncadd [#allocation4], %s24
      %s26 = sshll.u32 [#allocation3], 4
      %s27 = int_to_ptr.vmem [resolvable:$true] %s26
      %32 = dma.hbm_to_vmem [thread:$0]  %s3, 4096, %s27, [#allocation4], 128, 128, 8
    $region17: #{q_net_forward.1} parent=1 // pred_fallthru
      _
    // Predicated region
    $region18: #{q_net_forward.1} parent=1 // pred_check
      _
    $region19: #{q_net_forward.1} parent=1 // pred_check_branch
      %34 = sbr.rel (0) target = $region21
    $region20: #{q_net_forward.1} parent=1 // pred_region
      _
    $region21: #{q_net_forward.1} parent=1 // pred_fallthru
      _
    // Predicated region
    $region22: #{q_net_forward.1} parent=1 // pred_check
      _
    $region23: #{q_net_forward.1} parent=1 // pred_check_branch
      %36 = sbr.rel (0) target = $region25
    $region24: #{q_net_forward.1} parent=1 // pred_region
      _
    $region25: #{q_net_forward.1} parent=1 // pred_fallthru
      _
    // Predicated region
    $region26: #{q_net_forward.1} parent=1 // pred_check
      _
    $region27: #{q_net_forward.1} parent=1 // pred_check_branch
      %38 = sbr.rel (0) target = $region29
    $region28: #{q_net_forward.1} parent=1 // pred_region
      _
    $region29: #{q_net_forward.1} parent=1 // pred_fallthru
      _
    // Predicated region
    $region30: #{q_net_forward.1} parent=1 // pred_check
      _
    $region31: #{q_net_forward.1} parent=1 // pred_check_branch
      %40 = sbr.rel (0) target = $region33
    $region32: #{q_net_forward.1} parent=1 // pred_region
      %41 = dma.done [#allocation4], 4096
    $region33: #{q_net_forward.1} parent=1 // pred_fallthru
      _
    %v43 = vld [vmem:[%s0] sm:$0xf]
    %v44 = vld [vmem:[%s1] sm:$0xff]
    %v45 = vld [vmem:[%s1 + $0x8] sm:$0xff]
    %v46 = vld [vmem:[%s1 + $0x10] sm:$0x33]
    %v47 = vld [vmem:[%s2] sm:$0x3]
    %v49 = vlaneseq
    %v50 = vshrl.u32 %v49, 7
    %v51 = vsub.s32 0, %v50
    %v52 = vrot.slane %v47, %v51
    %v53 = vlaneseq
    %v54 = vshrl.u32 %v53, 7
    %v55 = vsub.s32 1, %v54
    %v56 = vrot.slane %v47, %v55
    %v62 = vunpack.c.l.b16 %v44
    %v63 = vunpack.c.h.b16 %v44
    %v64 = vunpack.c.l.b16 %v45
    %v65 = vunpack.c.h.b16 %v45
    %v66 = vunpack.c.l.b16 %v46
    %v67 = vunpack.c.h.b16 %v46
    %v68 = vpack.c.b16 %v64, %v62
    %v69 = vpack.c.b16 %v65, %v63
    %v70 = vpack.c.b16 %v66, %v66
    %v71 = vpack.c.b16 %v67, %v67
    %vm74 = vcmask 162816
    %v76 = vsel %vm74, %v43, 0
    %vm78 = vcmask 1041408
    %v80 = vsel %vm78, %v70, 0
    %v83 = vsel %vm78, %v71, 0
    %85 = vmatprep.subr.bf16.mxu0 0
    %86 = vmatpush1.bf16.msra.mxu0 0
    %87 = vmatprep.subr.bf16.mxu0 0
    %88 = vmatpush1.bf16.msra.mxu0 0
    %89 = vmatprep.subr.bf16.mxu0 0
    %90 = vmatpush1.bf16.msra.mxu0 0
    %91 = vmatprep.subr.bf16.mxu0 0
    %92 = vmatpush1.bf16.msra.mxu0 0
    %93 = vmatprep.subr.bf16.mxu0 0
    %94 = vmatpush1.bf16.msra.mxu0 0
    %95 = vmatprep.subr.bf16.mxu0 0
    %96 = vmatpush1.bf16.msra.mxu0 0
    %97 = vmatprep.subr.bf16.mxu0 %v83
    %98 = vmatpush1.bf16.msra.mxu0 %v80
    %99 = vmatprep.subr.bf16.mxu0 %v69
    %100 = vmatpush1.bf16.msra.mxu0 %v68
    %101 = vmatprep.subr.bf16.mxu0 0
    %102 = vmatpush2.bf16.msra.mxu0 0
    %103 = vmatprep.subr.bf16.mxu0 0
    %104 = vmatpush2.bf16.msra.mxu0 0
    %105 = vmatprep.subr.bf16.mxu0 0
    %106 = vmatpush2.bf16.msra.mxu0 0
    %107 = vmatprep.subr.bf16.mxu0 0
    %108 = vmatpush2.bf16.msra.mxu0 0
    %109 = vmatprep.subr.bf16.mxu0 0
    %110 = vmatpush2.bf16.msra.mxu0 0
    %111 = vmatprep.subr.bf16.mxu0 0
    %112 = vmatpush2.bf16.msra.mxu0 0
    %113 = vmatprep.subr.bf16.mxu0 0
    %114 = vmatpush2.bf16.msra.mxu0 0
    %115 = vmatprep.subr.bf16.mxu0 0
    %116 = vmatpush2.bf16.msra.mxu0 0
    %117 = vmatprep.mubr.bf16.mxu0 0
    %118 = vmatmul.mubr.bf16.gmra.mxu0 %v76
    %v119 = vpop.f32.mrf.mxu0
    %v120 = vadd.f32 %v52, %v119
    %v121 = vpop.f32.mrf.mxu0
    %v122 = vadd.f32 %v56, %v121
    %v123 = vpop.f32.mrf.mxu0
    %v124 = vpop.f32.mrf.mxu0
    %125 = vdwg.mxu0
    %v126 = vmax.f32 %v120, 0.0
    %v127 = vmax.f32 %v122, 0.0
    %v128 = vpack.c.bf16 %v126, %v126
    %v129 = vpack.c.bf16 %v127, %v127
    %v130 = vld [vmem:[#allocation3] sm:$0xff]
    %v131 = vld [vmem:[#allocation3 + $0x8] sm:$0xff]
    %v132 = vld [vmem:[#allocation3 + $0x10] sm:$0xff]
    %v133 = vld [vmem:[#allocation3 + $0x18] sm:$0xff]
    %v134 = vld [vmem:[#allocation3 + $0x20] sm:$0xff]
    %v135 = vld [vmem:[#allocation3 + $0x28] sm:$0xff]
    %v136 = vld [vmem:[#allocation3 + $0x30] sm:$0xff]
    %v137 = vld [vmem:[#allocation3 + $0x38] sm:$0xff]
    %v138 = vld [vmem:[#allocation3 + $0x40] sm:$0xff]
    %v139 = vld [vmem:[#allocation3 + $0x48] sm:$0xff]
    %v140 = vld [vmem:[#allocation3 + $0x50] sm:$0xff]
    %v141 = vld [vmem:[#allocation3 + $0x58] sm:$0xff]
    %v142 = vld [vmem:[#allocation3 + $0x60] sm:$0xff]
    %v143 = vld [vmem:[#allocation3 + $0x68] sm:$0xff]
    %v144 = vld [vmem:[#allocation3 + $0x70] sm:$0xff]
    %v145 = vld [vmem:[#allocation3 + $0x78] sm:$0xff]
    %v146 = vld [vmem:[#allocation3 + $0x80] sm:$0xff]
    %v147 = vld [vmem:[#allocation3 + $0x88] sm:$0xff]
    %v148 = vld [vmem:[#allocation3 + $0x90] sm:$0xff]
    %v149 = vld [vmem:[#allocation3 + $0x98] sm:$0xff]
    %v150 = vld [vmem:[#allocation3 + $0xa0] sm:$0xff]
    %v151 = vld [vmem:[#allocation3 + $0xa8] sm:$0xff]
    %v152 = vld [vmem:[#allocation3 + $0xb0] sm:$0xff]
    %v153 = vld [vmem:[#allocation3 + $0xb8] sm:$0xff]
    %v154 = vld [vmem:[#allocation3 + $0xc0] sm:$0xff]
    %v155 = vld [vmem:[#allocation3 + $0xc8] sm:$0xff]
    %v156 = vld [vmem:[#allocation3 + $0xd0] sm:$0xff]
    %v157 = vld [vmem:[#allocation3 + $0xd8] sm:$0xff]
    %v158 = vld [vmem:[#allocation3 + $0xe0] sm:$0xff]
    %v159 = vld [vmem:[#allocation3 + $0xe8] sm:$0xff]
    %v160 = vld [vmem:[#allocation3 + $0xf0] sm:$0xff]
    %v161 = vld [vmem:[#allocation3 + $0xf8] sm:$0xff]
    %v162 = vld [vmem:[%s4] sm:$0x3]
    %v164 = vlaneseq
    %v165 = vshrl.u32 %v164, 7
    %v166 = vsub.s32 0, %v165
    %v167 = vrot.slane %v162, %v166
    %v168 = vlaneseq
    %v169 = vshrl.u32 %v168, 7
    %v170 = vsub.s32 1, %v169
    %v171 = vrot.slane %v162, %v170
    %v206 = vunpack.c.l.b16 %v130
    %v207 = vunpack.c.h.b16 %v130
    %v208 = vunpack.c.l.b16 %v131
    %v209 = vunpack.c.h.b16 %v131
    %v210 = vunpack.c.l.b16 %v132
    %v211 = vunpack.c.h.b16 %v132
    %v212 = vunpack.c.l.b16 %v133
    %v213 = vunpack.c.h.b16 %v133
    %v214 = vunpack.c.l.b16 %v134
    %v215 = vunpack.c.h.b16 %v134
    %v216 = vunpack.c.l.b16 %v135
    %v217 = vunpack.c.h.b16 %v135
    %v218 = vunpack.c.l.b16 %v136
    %v219 = vunpack.c.h.b16 %v136
    %v220 = vunpack.c.l.b16 %v137
    %v221 = vunpack.c.h.b16 %v137
    %v222 = vunpack.c.l.b16 %v138
    %v223 = vunpack.c.h.b16 %v138
    %v224 = vunpack.c.l.b16 %v139
    %v225 = vunpack.c.h.b16 %v139
    %v226 = vunpack.c.l.b16 %v140
    %v227 = vunpack.c.h.b16 %v140
    %v228 = vunpack.c.l.b16 %v141
    %v229 = vunpack.c.h.b16 %v141
    %v230 = vunpack.c.l.b16 %v142
    %v231 = vunpack.c.h.b16 %v142
    %v232 = vunpack.c.l.b16 %v143
    %v233 = vunpack.c.h.b16 %v143
    %v234 = vunpack.c.l.b16 %v144
    %v235 = vunpack.c.h.b16 %v144
    %v236 = vunpack.c.l.b16 %v145
    %v237 = vunpack.c.h.b16 %v145
    %v238 = vunpack.c.l.b16 %v146
    %v239 = vunpack.c.h.b16 %v146
    %v240 = vunpack.c.l.b16 %v147
    %v241 = vunpack.c.h.b16 %v147
    %v242 = vunpack.c.l.b16 %v148
    %v243 = vunpack.c.h.b16 %v148
    %v244 = vunpack.c.l.b16 %v149
    %v245 = vunpack.c.h.b16 %v149
    %v246 = vunpack.c.l.b16 %v150
    %v247 = vunpack.c.h.b16 %v150
    %v248 = vunpack.c.l.b16 %v151
    %v249 = vunpack.c.h.b16 %v151
    %v250 = vunpack.c.l.b16 %v152
    %v251 = vunpack.c.h.b16 %v152
    %v252 = vunpack.c.l.b16 %v153
    %v253 = vunpack.c.h.b16 %v153
    %v254 = vunpack.c.l.b16 %v154
    %v255 = vunpack.c.h.b16 %v154
    %v256 = vunpack.c.l.b16 %v155
    %v257 = vunpack.c.h.b16 %v155
    %v258 = vunpack.c.l.b16 %v156
    %v259 = vunpack.c.h.b16 %v156
    %v260 = vunpack.c.l.b16 %v157
    %v261 = vunpack.c.h.b16 %v157
    %v262 = vunpack.c.l.b16 %v158
    %v263 = vunpack.c.h.b16 %v158
    %v264 = vunpack.c.l.b16 %v159
    %v265 = vunpack.c.h.b16 %v159
    %v266 = vunpack.c.l.b16 %v160
    %v267 = vunpack.c.h.b16 %v160
    %v268 = vunpack.c.l.b16 %v161
    %v269 = vunpack.c.h.b16 %v161
    %v270 = vpack.c.b16 %v208, %v206
    %v271 = vpack.c.b16 %v209, %v207
    %v272 = vpack.c.b16 %v212, %v210
    %v273 = vpack.c.b16 %v213, %v211
    %v274 = vpack.c.b16 %v216, %v214
    %v275 = vpack.c.b16 %v217, %v215
    %v276 = vpack.c.b16 %v220, %v218
    %v277 = vpack.c.b16 %v221, %v219
    %v278 = vpack.c.b16 %v224, %v222
    %v279 = vpack.c.b16 %v225, %v223
    %v280 = vpack.c.b16 %v228, %v226
    %v281 = vpack.c.b16 %v229, %v227
    %v282 = vpack.c.b16 %v232, %v230
    %v283 = vpack.c.b16 %v233, %v231
    %v284 = vpack.c.b16 %v236, %v234
    %v285 = vpack.c.b16 %v237, %v235
    %v286 = vpack.c.b16 %v240, %v238
    %v287 = vpack.c.b16 %v241, %v239
    %v288 = vpack.c.b16 %v244, %v242
    %v289 = vpack.c.b16 %v245, %v243
    %v290 = vpack.c.b16 %v248, %v246
    %v291 = vpack.c.b16 %v249, %v247
    %v292 = vpack.c.b16 %v252, %v250
    %v293 = vpack.c.b16 %v253, %v251
    %v294 = vpack.c.b16 %v256, %v254
    %v295 = vpack.c.b16 %v257, %v255
    %v296 = vpack.c.b16 %v260, %v258
    %v297 = vpack.c.b16 %v261, %v259
    %v298 = vpack.c.b16 %v264, %v262
    %v299 = vpack.c.b16 %v265, %v263
    %v300 = vpack.c.b16 %v268, %v266
    %v301 = vpack.c.b16 %v269, %v267
    %334 = vmatprep.subr.bf16.mxu0 %v285
    %335 = vmatpush1.bf16.msra.mxu0 %v284
    %336 = vmatprep.subr.bf16.mxu0 %v283
    %337 = vmatpush1.bf16.msra.mxu0 %v282
    %338 = vmatprep.subr.bf16.mxu0 %v281
    %339 = vmatpush1.bf16.msra.mxu0 %v280
    %340 = vmatprep.subr.bf16.mxu0 %v279
    %341 = vmatpush1.bf16.msra.mxu0 %v278
    %342 = vmatprep.subr.bf16.mxu0 %v277
    %343 = vmatpush1.bf16.msra.mxu0 %v276
    %344 = vmatprep.subr.bf16.mxu0 %v275
    %345 = vmatpush1.bf16.msra.mxu0 %v274
    %346 = vmatprep.subr.bf16.mxu0 %v273
    %347 = vmatpush1.bf16.msra.mxu0 %v272
    %348 = vmatprep.subr.bf16.mxu0 %v271
    %349 = vmatpush1.bf16.msra.mxu0 %v270
    %350 = vmatprep.subr.bf16.mxu0 %v301
    %351 = vmatpush2.bf16.msra.mxu0 %v300
    %352 = vmatprep.subr.bf16.mxu0 %v299
    %353 = vmatpush2.bf16.msra.mxu0 %v298
    %354 = vmatprep.subr.bf16.mxu0 %v297
    %355 = vmatpush2.bf16.msra.mxu0 %v296
    %356 = vmatprep.subr.bf16.mxu0 %v295
    %357 = vmatpush2.bf16.msra.mxu0 %v294
    %358 = vmatprep.subr.bf16.mxu0 %v293
    %359 = vmatpush2.bf16.msra.mxu0 %v292
    %360 = vmatprep.subr.bf16.mxu0 %v291
    %361 = vmatpush2.bf16.msra.mxu0 %v290
    %362 = vmatprep.subr.bf16.mxu0 %v289
    %363 = vmatpush2.bf16.msra.mxu0 %v288
    %364 = vmatprep.subr.bf16.mxu0 %v287
    %365 = vmatpush2.bf16.msra.mxu0 %v286
    %366 = vmatprep.mubr.bf16.mxu0 %v129
    %367 = vmatmul.mubr.bf16.gmra.mxu0 %v128
    %v368 = vpop.f32.mrf.mxu0
    %v369 = vadd.f32 %v167, %v368
    %v370 = vpop.f32.mrf.mxu0
    %v371 = vadd.f32 %v171, %v370
    %v372 = vpop.f32.mrf.mxu0
    %v373 = vpop.f32.mrf.mxu0
    %374 = vdwg.mxu0
    %v375 = vmax.f32 %v369, 0.0
    %v376 = vmax.f32 %v371, 0.0
    %v377 = vld [vmem:[%s5] sm:$0x3]
    %v379 = vlaneseq
    %v380 = vshrl.u32 %v379, 7
    %v381 = vsub.s32 0, %v380
    %v382 = vrot.slane %v377, %v381
    %v383 = vlaneseq
    %v384 = vshrl.u32 %v383, 7
    %v385 = vsub.s32 1, %v384
    %v386 = vrot.slane %v377, %v385
    %v389 = vmul.f32 %v375, %v382
    %v390 = vmul.f32 %v376, %v386
    %v391 = vadd.f32 %v389, %v390
    %392 = vadd.xlane.f32.xlu0 %v391
    %v393 = vpop.xlane.xlu0 %392
    %s394 = sld [smem:[#allocation2]]
    %v395 = vstv %s394
    %v396 = vadd.f32 %v393, %v395
    %v398 = vlaneseq
    %v399 = vand.u32 %v398, 127
    %v400 = vlaneseq
    %v401 = vshrl.u32 %v400, 7
    %v402 = vsub.s32 %v399, %v401
    %v403 = vrot.slane %v396, %v402
    %vm405 = vcmask 57344
    %406 = vst.msk [vmem:[#allocation6] sm:$0x1] %vm405, %v403
    // Predicated region
    $region34: #{q_net_forward.1} parent=1 // pred_check
      _
    $region35: #{q_net_forward.1} parent=1 // pred_check_branch
      %408 = sbr.rel (0) target = $region37
    $region36: #{q_net_forward.1} parent=1 // pred_region
      %s410 = ssub.s32 16, 16
      %411 = vsyncadd [#allocation5], %s410
      %s413 = sshll.u32 [#allocation6], 4
      %s414 = int_to_ptr.vmem [resolvable:$true] %s413
      %416 = dma.vmem_to_hbm [thread:$0]  %s414, 16, %s7, [#allocation5]
    $region37: #{q_net_forward.1} parent=1 // pred_fallthru
      _
    // Predicated region
    $region38: #{q_net_forward.1} parent=1 // pred_check
      _
    $region39: #{q_net_forward.1} parent=1 // pred_check_branch
      %418 = sbr.rel (0) target = $region41
    $region40: #{q_net_forward.1} parent=1 // pred_region
      %419 = dma.done [#allocation5], 16
    $region41: #{q_net_forward.1} parent=1 // pred_fallthru
      _
    %420 = vsyncpa [#allocation4], 1
    %421 = vsyncpa [#allocation5], 1

</llo_original>
